<compile_context>
chip_gen: v7x
topology: tpu7x:2x2x1
jax: 0.10.0
libtpu: 0.0.40
codegen_flags: <defaults>
</compile_context>

<pallas_src>
import functools
import math

import jax
import jax.numpy as jnp
from jax import lax
from jax.experimental import pallas as pl
from jax.experimental.pallas import tpu as pltpu


def _gelu_exact(x):
    # nn.GELU() default is the exact (erf-based) GELU.
    return 0.5 * x * (1.0 + lax.erf(x * (1.0 / math.sqrt(2.0))))


# ----------------------------------------------------------------------------
# Kernel 1: per-row-block encoder  (Linear -> GELU -> Linear -> L2-normalize)
# ----------------------------------------------------------------------------
def _encoder_kernel(x_ref, wa_ref, ba_ref, wb_ref, bb_ref, out_ref, *, scale):
    h = jnp.dot(x_ref[...], wa_ref[...],
                preferred_element_type=jnp.float32) + ba_ref[...]
    h = _gelu_exact(h)
    e = jnp.dot(h, wb_ref[...],
                preferred_element_type=jnp.float32) + bb_ref[...]
    # Row-wise L2 normalization via rsqrt (EUP) + multiply (VPU); no divide.
    # Zero-padded embedding columns stay exactly 0 so they don't perturb the
    # norm (or, later, the dot products).
    inv = lax.rsqrt(jnp.sum(e * e, axis=-1, keepdims=True))
    if scale != 1.0:
        inv = inv * scale            # fold exp(temp) into the embedding
    out_ref[...] = (e * inv).astype(out_ref.dtype)


def _encode(x, params, scale, tile_rows, out_dtype=jnp.float32):
    wa, ba, wb, bb = params
    n, d = x.shape
    h_dim = wa.shape[1]
    e_dim = wb.shape[1]
    assert n % tile_rows == 0

    cost = pl.CostEstimate(
        flops=2 * n * d * h_dim + 2 * n * h_dim * e_dim,
        transcendentals=n * (h_dim + 1),
        bytes_accessed=4 * (n * d + d * h_dim + h_dim * e_dim + n * e_dim),
    )

    return pl.pallas_call(
        functools.partial(_encoder_kernel, scale=scale),
        out_shape=jax.ShapeDtypeStruct((n, e_dim), out_dtype),
        grid_spec=pltpu.PrefetchScalarGridSpec(
            num_scalar_prefetch=0,
            grid=(n // tile_rows,),
            in_specs=[
                pl.BlockSpec((tile_rows, d), lambda i: (i, 0)),
                # tiny weights/biases: full-array blocks, constant index_map
                # -> stay resident across grid steps (no re-DMA).
                pl.BlockSpec((d, h_dim), lambda i: (0, 0)),
                pl.BlockSpec((1, h_dim), lambda i: (0, 0)),
                pl.BlockSpec((h_dim, e_dim), lambda i: (0, 0)),
                pl.BlockSpec((1, e_dim), lambda i: (0, 0)),
            ],
            out_specs=pl.BlockSpec((tile_rows, e_dim), lambda i: (i, 0)),
        ),
        compiler_params=pltpu.CompilerParams(
            dimension_semantics=("parallel",)),
        cost_estimate=cost,
    )(x, wa, ba, wb, bb)


# ----------------------------------------------------------------------------
# Kernel 2: tiled similarity  out[i,j] = sum_k emb1[i,k] * emb2[j,k]
# (contraction on the last dim of BOTH operands -> no transpose / XLU copy)
# ----------------------------------------------------------------------------
def _similarity_kernel(e1_ref, e2_ref, out_ref):
    out_ref[...] = lax.dot_general(
        e1_ref[...], e2_ref[...],
        dimension_numbers=(((1,), (1,)), ((), ())),
        preferred_element_type=jnp.float32,
    ).astype(out_ref.dtype)


def _similarity(e1, e2, tm, tn):
    n1, e_dim = e1.shape
    n2 = e2.shape[0]
    assert n1 % tm == 0 and n2 % tn == 0

    cost = pl.CostEstimate(
        flops=2 * n1 * n2 * e_dim,
        transcendentals=0,
        bytes_accessed=(e1.dtype.itemsize * n1 * e_dim
                        + e2.dtype.itemsize * n2 * e_dim
                        + 4 * n1 * n2),
    )

    return pl.pallas_call(
        _similarity_kernel,
        out_shape=jax.ShapeDtypeStruct((n1, n2), jnp.float32),
        grid_spec=pltpu.PrefetchScalarGridSpec(
            num_scalar_prefetch=0,
            grid=(n1 // tm, n2 // tn),
            in_specs=[
                pl.BlockSpec((tm, e_dim), lambda i, j: (i, 0)),
                pl.BlockSpec((tn, e_dim), lambda i, j: (j, 0)),
            ],
            out_specs=pl.BlockSpec((tm, tn), lambda i, j: (i, j)),
        ),
        compiler_params=pltpu.CompilerParams(
            dimension_semantics=("parallel", "parallel")),
        cost_estimate=cost,
    )(e1, e2)


# ----------------------------------------------------------------------------
# Wrapper
# ----------------------------------------------------------------------------
def _round_up(n, m):
    return ((n + m - 1) // m) * m


def _pad_rows(x, n_pad):
    n = x.shape[0]
    if n_pad == n:
        return x
    return jnp.pad(x, ((0, n_pad - n), (0, 0)))


def _pad_embed_dim(params, e_pad):
    """Zero-pad W2 columns / b2 entries so the embedding dim is lane-dense.

    The padded embedding columns are exactly 0, so row norms and dot products
    are unchanged.
    """
    wa, ba, wb, bb = params
    e_dim = wb.shape[1]
    if e_pad == e_dim:
        return params
    wb = jnp.pad(wb, ((0, 0), (0, e_pad - e_dim)))
    bb = jnp.pad(bb, ((0, 0), (0, e_pad - e_dim)))
    return (wa, ba, wb, bb)


def scmogcn_forward(m1, m2, enc1_params, enc2_params, temp=1.0,
                    tile_m=256, tile_n=256, mxu_dtype=jnp.float32):
    """ScMoGCN forward: logits[N1, N2] = normalize(MLP1(m1)) @ normalize(MLP2(m2)).T * exp(temp).

    tile_m/tile_n: output tile sizes for large problems (256 = MXU-native on
    v6e/v7x; double-buffers comfortably within v7x's 64 MiB VMEM).
    mxu_dtype: dtype of the embeddings fed to the similarity MXU matmul
    (jnp.bfloat16 gives 2-4x MXU throughput; default f32 preserves the exact
    PyTorch numerics / 1e-4 tolerance).
    """
    n1, n2 = m1.shape[0], m2.shape[0]
    e_dim = enc1_params[2].shape[1]
    assert enc2_params[2].shape[1] == e_dim

    # Row tile: full when small (rounded to a sublane multiple), else tile_m.
    tm = tile_m if n1 > tile_m else _round_up(n1, 8)
    # Column tile: keep the logits' lane dim a multiple of 128 so output
    # stores are unmasked / lane-dense.
    tn = tile_n if n2 > tile_n else _round_up(n2, 128)

    n1p = _round_up(n1, tm)
    n2p = _round_up(n2, tn)
    m1p = _pad_rows(m1, n1p)
    m2p = _pad_rows(m2, n2p)

    # Lane-dense embedding dim (zero-padded weight columns -> exact).
    e_pad = _round_up(e_dim, 128)
    p1 = _pad_embed_dim(enc1_params, e_pad)
    p2 = _pad_embed_dim(enc2_params, e_pad)

    scale = math.exp(temp)   # plain float in the module -> compile-time const

    # Encoders (exp(temp) folded into emb1 only).
    e1 = _encode(m1p, p1, scale, tm, out_dtype=mxu_dtype)
    e2 = _encode(m2p, p2, 1.0, tn, out_dtype=mxu_dtype)

    # Tiled similarity matmul.
    sim = _similarity(e1, e2, tm, tn)

    if n1p != n1 or n2p != n2:
        sim = sim[:n1, :n2]
    return sim
    # TODO(synk): if the input/hidden dims stay this tiny in production, the
    # forward is launch-overhead bound regardless of body tuning; consider
    # fusing both encoders + similarity into a single pallas_call.


# ----------------------------------------------------------------------------
# Test harness
# ----------------------------------------------------------------------------
def _init_linear(key, d_in, d_out):
    # Deterministic synthetic init (uniform, roughly nn.Linear's scale).
    kw, kb = jax.random.split(key)
    bound = 1.0 / math.sqrt(d_in)
    w = jax.random.uniform(kw, (d_in, d_out), jnp.float32, -bound, bound)
    b = jax.random.uniform(kb, (1, d_out), jnp.float32, -bound, bound)
    return w, b


def _reference(m1, m2, p1, p2, temp):
    def enc(x, p):
        wa, ba, wb, bb = p
        h = jax.nn.gelu(x @ wa + ba, approximate=False)
        e = h @ wb + bb
        return e / jnp.linalg.norm(e, axis=-1, keepdims=True)
    e1, e2 = enc(m1, p1), enc(m2, p2)
    return (e1 @ e2.T) * math.exp(temp)


if __name__ == "__main__":
    # Small shapes consistent with the module:
    #   layers[0] = [(D1, H), (H, E)]   -> encoder for modality 1
    #   layers[1] = [(D2, H), (H, E)]   -> encoder for modality 2
    N1, N2 = 16, 8
    D1, D2 = 32, 48
    H, E = 64, 16
    TEMP = 1.0

    key = jax.random.PRNGKey(0)
    k_m1, k_m2, k1a, k1b, k2a, k2b = jax.random.split(key, 6)

    m1 = jax.random.normal(k_m1, (N1, D1), jnp.float32)
    m2 = jax.random.normal(k_m2, (N2, D2), jnp.float32)

    enc1 = (*_init_linear(k1a, D1, H), *_init_linear(k1b, H, E))
    enc2 = (*_init_linear(k2a, D2, H), *_init_linear(k2b, H, E))

    fwd = jax.jit(functools.partial(scmogcn_forward, temp=TEMP))
    out = fwd(m1, m2, enc1, enc2)
    out = jax.block_until_ready(out)

    ref = _reference(m1, m2, enc1, enc2, TEMP)
    assert out.shape == (N1, N2)
    assert jnp.allclose(out, ref, atol=1e-4, rtol=1e-4), \
        float(jnp.max(jnp.abs(out - ref)))

    print("KERNEL_OK")
</pallas_src>

<mosaic_0001>
module attributes {stable_mosaic.version = 11 : i64} {
  func.func @_encoder_kernel(%arg0: i32, %arg1: memref<128x48xf32, #tpu.memory_space<vmem>>, %arg2: memref<48x64xf32, #tpu.memory_space<vmem>>, %arg3: memref<1x64xf32, #tpu.memory_space<vmem>>, %arg4: memref<64x128xf32, #tpu.memory_space<vmem>>, %arg5: memref<1x128xf32, #tpu.memory_space<vmem>>, %arg6: memref<128x128xf32, #tpu.memory_space<vmem>>) attributes {dimension_semantics = [#tpu.dimension_semantics<parallel>], iteration_bounds = array<i64: 1>, scalar_prefetch = 0 : i64, scratch_operands = 0 : i64, tpu.core_type = #tpu.core_type<tc>, window_params = [{transform_indices = @transform_0, window_bounds = array<i64: 128, 48>}, {pipeline_mode = #tpu.pipeline_mode<synchronous>, transform_indices = @transform_1, window_bounds = array<i64: 48, 64>}, {pipeline_mode = #tpu.pipeline_mode<synchronous>, transform_indices = @transform_2, window_bounds = array<i64: 1, 64>}, {pipeline_mode = #tpu.pipeline_mode<synchronous>, transform_indices = @transform_3, window_bounds = array<i64: 64, 128>}, {pipeline_mode = #tpu.pipeline_mode<synchronous>, transform_indices = @transform_4, window_bounds = array<i64: 1, 128>}, {transform_indices = @transform_5, window_bounds = array<i64: 128, 128>}]} {
    %c0 = arith.constant 0 : index
    %c0_0 = arith.constant 0 : index
    %0 = vector.load %arg1[%c0, %c0_0] : memref<128x48xf32, #tpu.memory_space<vmem>>, vector<128x48xf32>
    %c0_1 = arith.constant 0 : index
    %c0_2 = arith.constant 0 : index
    %1 = vector.load %arg2[%c0_1, %c0_2] : memref<48x64xf32, #tpu.memory_space<vmem>>, vector<48x64xf32>
    %cst = arith.constant dense<0.000000e+00> : vector<128x64xf32>
    %2 = tpu.matmul %0, %1, %cst {dimension_numbers = #tpu.dot_dimension_numbers<[1], [0], [0], [1], [0, 0, 1, 1], [], []>} : vector<128x48xf32>, vector<48x64xf32>, vector<128x64xf32> -> vector<128x64xf32>
    %c0_3 = arith.constant 0 : index
    %c0_4 = arith.constant 0 : index
    %3 = vector.load %arg3[%c0_3, %c0_4] : memref<1x64xf32, #tpu.memory_space<vmem>>, vector<1x64xf32>
    %4 = vector.broadcast %3 : vector<1x64xf32> to vector<128x64xf32>
    %5 = arith.addf %2, %4 : vector<128x64xf32>
    %cst_5 = arith.constant 5.000000e-01 : f32
    %6 = vector.broadcast %cst_5 : f32 to vector<128x64xf32>
    %7 = arith.mulf %6, %5 : vector<128x64xf32>
    %cst_6 = arith.constant 0.707106769 : f32
    %8 = vector.broadcast %cst_6 : f32 to vector<128x64xf32>
    %9 = arith.mulf %5, %8 : vector<128x64xf32>
    %10 = math.erf %9 : vector<128x64xf32>
    %cst_7 = arith.constant 1.000000e+00 : f32
    %11 = vector.broadcast %cst_7 : f32 to vector<128x64xf32>
    %12 = arith.addf %11, %10 : vector<128x64xf32>
    %13 = arith.mulf %7, %12 : vector<128x64xf32>
    %c0_8 = arith.constant 0 : index
    %c0_9 = arith.constant 0 : index
    %14 = vector.load %arg4[%c0_8, %c0_9] : memref<64x128xf32, #tpu.memory_space<vmem>>, vector<64x128xf32>
    %cst_10 = arith.constant dense<0.000000e+00> : vector<128x128xf32>
    %15 = tpu.matmul %13, %14, %cst_10 {dimension_numbers = #tpu.dot_dimension_numbers<[1], [0], [0], [1], [0, 0, 1, 1], [], []>} : vector<128x64xf32>, vector<64x128xf32>, vector<128x128xf32> -> vector<128x128xf32>
    %c0_11 = arith.constant 0 : index
    %c0_12 = arith.constant 0 : index
    %16 = vector.load %arg5[%c0_11, %c0_12] : memref<1x128xf32, #tpu.memory_space<vmem>>, vector<1x128xf32>
    %17 = vector.broadcast %16 : vector<1x128xf32> to vector<128x128xf32>
    %18 = arith.addf %15, %17 : vector<128x128xf32>
    %19 = arith.mulf %18, %18 : vector<128x128xf32>
    %cst_13 = arith.constant dense<0.000000e+00> : vector<128xf32>
    %20 = vector.multi_reduction <add>, %19, %cst_13 [1] : vector<128x128xf32> to vector<128xf32>
    %21 = vector.shape_cast %20 : vector<128xf32> to vector<128x1xf32>
    %22 = math.rsqrt %21 : vector<128x1xf32>
    %23 = vector.broadcast %22 : vector<128x1xf32> to vector<128x128xf32>
    %24 = arith.mulf %18, %23 : vector<128x128xf32>
    %c0_14 = arith.constant 0 : index
    %c0_15 = arith.constant 0 : index
    %25 = vector.load %arg6[%c0_14, %c0_15] : memref<128x128xf32, #tpu.memory_space<vmem>>, vector<128x128xf32>
    tpu.vector_store %arg6[%c0_14, %c0_15], %24 {strides = array<i32>} : memref<128x128xf32, #tpu.memory_space<vmem>>, vector<128x128xf32>,
    return
  }
  func.func @transform_0(%arg0: i32) -> (i32, i32) {
    %c0_i32 = arith.constant 0 : i32
    %c0_i32_0 = arith.constant 0 : i32
    return %arg0, %c0_i32 : i32, i32
  }
  func.func @transform_1(%arg0: i32) -> (i32, i32) {
    %c0_i32 = arith.constant 0 : i32
    %c0_i32_0 = arith.constant 0 : i32
    %c0_i32_1 = arith.constant 0 : i32
    return %c0_i32, %c0_i32_0 : i32, i32
  }
  func.func @transform_2(%arg0: i32) -> (i32, i32) {
    %c0_i32 = arith.constant 0 : i32
    %c0_i32_0 = arith.constant 0 : i32
    %c0_i32_1 = arith.constant 0 : i32
    return %c0_i32, %c0_i32_0 : i32, i32
  }
  func.func @transform_3(%arg0: i32) -> (i32, i32) {
    %c0_i32 = arith.constant 0 : i32
    %c0_i32_0 = arith.constant 0 : i32
    %c0_i32_1 = arith.constant 0 : i32
    return %c0_i32, %c0_i32_0 : i32, i32
  }
  func.func @transform_4(%arg0: i32) -> (i32, i32) {
    %c0_i32 = arith.constant 0 : i32
    %c0_i32_0 = arith.constant 0 : i32
    %c0_i32_1 = arith.constant 0 : i32
    return %c0_i32, %c0_i32_0 : i32, i32
  }
  func.func @transform_5(%arg0: i32) -> (i32, i32) {
    %c0_i32 = arith.constant 0 : i32
    %c0_i32_0 = arith.constant 0 : i32
    return %arg0, %c0_i32 : i32, i32
  }
}

module attributes {stable_mosaic.version = 11 : i64} {
  func.func @_encoder_kernel(%arg0: i32, %arg1: memref<16x32xf32, #tpu.memory_space<vmem>>, %arg2: memref<32x64xf32, #tpu.memory_space<vmem>>, %arg3: memref<1x64xf32, #tpu.memory_space<vmem>>, %arg4: memref<64x128xf32, #tpu.memory_space<vmem>>, %arg5: memref<1x128xf32, #tpu.memory_space<vmem>>, %arg6: memref<16x128xf32, #tpu.memory_space<vmem>>) attributes {dimension_semantics = [#tpu.dimension_semantics<parallel>], iteration_bounds = array<i64: 1>, scalar_prefetch = 0 : i64, scratch_operands = 0 : i64, tpu.core_type = #tpu.core_type<tc>, window_params = [{transform_indices = @transform_0, window_bounds = array<i64: 16, 32>}, {pipeline_mode = #tpu.pipeline_mode<synchronous>, transform_indices = @transform_1, window_bounds = array<i64: 32, 64>}, {pipeline_mode = #tpu.pipeline_mode<synchronous>, transform_indices = @transform_2, window_bounds = array<i64: 1, 64>}, {pipeline_mode = #tpu.pipeline_mode<synchronous>, transform_indices = @transform_3, window_bounds = array<i64: 64, 128>}, {pipeline_mode = #tpu.pipeline_mode<synchronous>, transform_indices = @transform_4, window_bounds = array<i64: 1, 128>}, {transform_indices = @transform_5, window_bounds = array<i64: 16, 128>}]} {
    %c0 = arith.constant 0 : index
    %c0_0 = arith.constant 0 : index
    %0 = vector.load %arg1[%c0, %c0_0] : memref<16x32xf32, #tpu.memory_space<vmem>>, vector<16x32xf32>
    %c0_1 = arith.constant 0 : index
    %c0_2 = arith.constant 0 : index
    %1 = vector.load %arg2[%c0_1, %c0_2] : memref<32x64xf32, #tpu.memory_space<vmem>>, vector<32x64xf32>
    %cst = arith.constant dense<0.000000e+00> : vector<16x64xf32>
    %2 = tpu.matmul %0, %1, %cst {dimension_numbers = #tpu.dot_dimension_numbers<[1], [0], [0], [1], [0, 0, 1, 1], [], []>} : vector<16x32xf32>, vector<32x64xf32>, vector<16x64xf32> -> vector<16x64xf32>
    %c0_3 = arith.constant 0 : index
    %c0_4 = arith.constant 0 : index
    %3 = vector.load %arg3[%c0_3, %c0_4] : memref<1x64xf32, #tpu.memory_space<vmem>>, vector<1x64xf32>
    %4 = vector.broadcast %3 : vector<1x64xf32> to vector<16x64xf32>
    %5 = arith.addf %2, %4 : vector<16x64xf32>
    %cst_5 = arith.constant 5.000000e-01 : f32
    %6 = vector.broadcast %cst_5 : f32 to vector<16x64xf32>
    %7 = arith.mulf %6, %5 : vector<16x64xf32>
    %cst_6 = arith.constant 0.707106769 : f32
    %8 = vector.broadcast %cst_6 : f32 to vector<16x64xf32>
    %9 = arith.mulf %5, %8 : vector<16x64xf32>
    %10 = math.erf %9 : vector<16x64xf32>
    %cst_7 = arith.constant 1.000000e+00 : f32
    %11 = vector.broadcast %cst_7 : f32 to vector<16x64xf32>
    %12 = arith.addf %11, %10 : vector<16x64xf32>
    %13 = arith.mulf %7, %12 : vector<16x64xf32>
    %c0_8 = arith.constant 0 : index
    %c0_9 = arith.constant 0 : index
    %14 = vector.load %arg4[%c0_8, %c0_9] : memref<64x128xf32, #tpu.memory_space<vmem>>, vector<64x128xf32>
    %cst_10 = arith.constant dense<0.000000e+00> : vector<16x128xf32>
    %15 = tpu.matmul %13, %14, %cst_10 {dimension_numbers = #tpu.dot_dimension_numbers<[1], [0], [0], [1], [0, 0, 1, 1], [], []>} : vector<16x64xf32>, vector<64x128xf32>, vector<16x128xf32> -> vector<16x128xf32>
    %c0_11 = arith.constant 0 : index
    %c0_12 = arith.constant 0 : index
    %16 = vector.load %arg5[%c0_11, %c0_12] : memref<1x128xf32, #tpu.memory_space<vmem>>, vector<1x128xf32>
    %17 = vector.broadcast %16 : vector<1x128xf32> to vector<16x128xf32>
    %18 = arith.addf %15, %17 : vector<16x128xf32>
    %19 = arith.mulf %18, %18 : vector<16x128xf32>
    %cst_13 = arith.constant dense<0.000000e+00> : vector<16xf32>
    %20 = vector.multi_reduction <add>, %19, %cst_13 [1] : vector<16x128xf32> to vector<16xf32>
    %21 = vector.shape_cast %20 : vector<16xf32> to vector<16x1xf32>
    %22 = math.rsqrt %21 : vector<16x1xf32>
    %cst_14 = arith.constant 2.71828175 : f32
    %23 = vector.broadcast %cst_14 : f32 to vector<16x1xf32>
    %24 = arith.mulf %22, %23 : vector<16x1xf32>
    %25 = vector.broadcast %24 : vector<16x1xf32> to vector<16x128xf32>
    %26 = arith.mulf %18, %25 : vector<16x128xf32>
    %c0_15 = arith.constant 0 : index
    %c0_16 = arith.constant 0 : index
    %27 = vector.load %arg6[%c0_15, %c0_16] : memref<16x128xf32, #tpu.memory_space<vmem>>, vector<16x128xf32>
    tpu.vector_store %arg6[%c0_15, %c0_16], %26 {strides = array<i32>} : memref<16x128xf32, #tpu.memory_space<vmem>>, vector<16x128xf32>,
    return
  }
  func.func @transform_0(%arg0: i32) -> (i32, i32) {
    %c0_i32 = arith.constant 0 : i32
    %c0_i32_0 = arith.constant 0 : i32
    return %arg0, %c0_i32 : i32, i32
  }
  func.func @transform_1(%arg0: i32) -> (i32, i32) {
    %c0_i32 = arith.constant 0 : i32
    %c0_i32_0 = arith.constant 0 : i32
    %c0_i32_1 = arith.constant 0 : i32
    return %c0_i32, %c0_i32_0 : i32, i32
  }
  func.func @transform_2(%arg0: i32) -> (i32, i32) {
    %c0_i32 = arith.constant 0 : i32
    %c0_i32_0 = arith.constant 0 : i32
    %c0_i32_1 = arith.constant 0 : i32
    return %c0_i32, %c0_i32_0 : i32, i32
  }
  func.func @transform_3(%arg0: i32) -> (i32, i32) {
    %c0_i32 = arith.constant 0 : i32
    %c0_i32_0 = arith.constant 0 : i32
    %c0_i32_1 = arith.constant 0 : i32
    return %c0_i32, %c0_i32_0 : i32, i32
  }
  func.func @transform_4(%arg0: i32) -> (i32, i32) {
    %c0_i32 = arith.constant 0 : i32
    %c0_i32_0 = arith.constant 0 : i32
    %c0_i32_1 = arith.constant 0 : i32
    return %c0_i32, %c0_i32_0 : i32, i32
  }
  func.func @transform_5(%arg0: i32) -> (i32, i32) {
    %c0_i32 = arith.constant 0 : i32
    %c0_i32_0 = arith.constant 0 : i32
    return %arg0, %c0_i32 : i32, i32
  }
}

module attributes {stable_mosaic.version = 11 : i64} {
  func.func @_similarity_kernel(%arg0: i32, %arg1: i32, %arg2: memref<16x128xf32, #tpu.memory_space<vmem>>, %arg3: memref<128x128xf32, #tpu.memory_space<vmem>>, %arg4: memref<16x128xf32, #tpu.memory_space<vmem>>) attributes {dimension_semantics = [#tpu.dimension_semantics<parallel>, #tpu.dimension_semantics<parallel>], iteration_bounds = array<i64: 1, 1>, scalar_prefetch = 0 : i64, scratch_operands = 0 : i64, tpu.core_type = #tpu.core_type<tc>, window_params = [{transform_indices = @transform_0, window_bounds = array<i64: 16, 128>}, {transform_indices = @transform_1, window_bounds = array<i64: 128, 128>}, {transform_indices = @transform_2, window_bounds = array<i64: 16, 128>}]} {
    %c0 = arith.constant 0 : index
    %c0_0 = arith.constant 0 : index
    %0 = vector.load %arg2[%c0, %c0_0] : memref<16x128xf32, #tpu.memory_space<vmem>>, vector<16x128xf32>
    %c0_1 = arith.constant 0 : index
    %c0_2 = arith.constant 0 : index
    %1 = vector.load %arg3[%c0_1, %c0_2] : memref<128x128xf32, #tpu.memory_space<vmem>>, vector<128x128xf32>
    %cst = arith.constant dense<0.000000e+00> : vector<16x128xf32>
    %2 = tpu.matmul %0, %1, %cst {dimension_numbers = #tpu.dot_dimension_numbers<[1], [1], [0], [0], [0, 0, 1, 0], [], []>} : vector<16x128xf32>, vector<128x128xf32>, vector<16x128xf32> -> vector<16x128xf32>
    %c0_3 = arith.constant 0 : index
    %c0_4 = arith.constant 0 : index
    %3 = vector.load %arg4[%c0_3, %c0_4] : memref<16x128xf32, #tpu.memory_space<vmem>>, vector<16x128xf32>
    tpu.vector_store %arg4[%c0_3, %c0_4], %2 {strides = array<i32>} : memref<16x128xf32, #tpu.memory_space<vmem>>, vector<16x128xf32>,
    return
  }
  func.func @transform_0(%arg0: i32, %arg1: i32) -> (i32, i32) {
    %c0_i32 = arith.constant 0 : i32
    %c0_i32_0 = arith.constant 0 : i32
    return %arg0, %c0_i32 : i32, i32
  }
  func.func @transform_1(%arg0: i32, %arg1: i32) -> (i32, i32) {
    %c0_i32 = arith.constant 0 : i32
    %c0_i32_0 = arith.constant 0 : i32
    return %arg1, %c0_i32 : i32, i32
  }
  func.func @transform_2(%arg0: i32, %arg1: i32) -> (i32, i32) {
    %c0_i32 = arith.constant 0 : i32
    return %arg0, %arg1 : i32, i32
  }
}

</mosaic_0001>

<llo_original>
// kernel: scmogcn_forward.5
$region0: #{scmogcn_forward.5}
  #allocation0 [shape = 'u32[]', space=smem, size = 0x4, offset = 0x4, fixed_abs, tag = 'smem constant byte address 0x4 - core index']
  #allocation1 [shape = 'u32[144,128]{1,0:T(1,128)}', space=vmem, size = 0x12000, scoped, tag = 'internal scratch']
  %s0 = inlined_call_operand.vmem [shape: f32[16,128], index: 0, kind: input, shape index: {}]
  %s1 = inlined_call_operand.vmem [shape: f32[128,128], index: 1, kind: input, shape index: {}]
  %s2 = inlined_call_operand.vmem [shape: f32[16,128], index: 2, kind: output, shape index: {}]
  %s3 = sld [smem:[#allocation0]]
  $region18: #{scmogcn_forward.5} parent=0
    _
  %s5 = ssub.s32 1, %s3
  %s6 = scalar_select 0, %s5, %s3
  // Predicated region
  $region2: #{scmogcn_forward.5} parent=0 // pred_check
    _
  $region3: #{scmogcn_forward.5} parent=0 // pred_check_branch
    %8 = sbr.rel (0) target = $region5
  $region4: #{scmogcn_forward.5} parent=0 // pred_region
    _
  $region5: #{scmogcn_forward.5} parent=0 // pred_fallthru
    _
  // Predicated region
  $region6: #{scmogcn_forward.5} parent=0 // pred_check
    _
  $region7: #{scmogcn_forward.5} parent=0 // pred_check_branch
    %10 = sbr.rel (0) target = $region9
  $region8: #{scmogcn_forward.5} parent=0 // pred_region
    _
  $region9: #{scmogcn_forward.5} parent=0 // pred_fallthru
    _
  %v11 = vld [vmem:[%s0] sm:$0xff]
  %v12 = vld [vmem:[%s0 + $0x8] sm:$0xff]
  %v13 = vld [vmem:[%s1] sm:$0xff]
  %v14 = vld [vmem:[%s1 + $0x8] sm:$0xff]
  %v15 = vld [vmem:[%s1 + $0x10] sm:$0xff]
  %v16 = vld [vmem:[%s1 + $0x18] sm:$0xff]
  %v17 = vld [vmem:[%s1 + $0x20] sm:$0xff]
  %v18 = vld [vmem:[%s1 + $0x28] sm:$0xff]
  %v19 = vld [vmem:[%s1 + $0x30] sm:$0xff]
  %v20 = vld [vmem:[%s1 + $0x38] sm:$0xff]
  %v21 = vld [vmem:[%s1 + $0x40] sm:$0xff]
  %v22 = vld [vmem:[%s1 + $0x48] sm:$0xff]
  %v23 = vld [vmem:[%s1 + $0x50] sm:$0xff]
  %v24 = vld [vmem:[%s1 + $0x58] sm:$0xff]
  %v25 = vld [vmem:[%s1 + $0x60] sm:$0xff]
  %v26 = vld [vmem:[%s1 + $0x68] sm:$0xff]
  %v27 = vld [vmem:[%s1 + $0x70] sm:$0xff]
  %v28 = vld [vmem:[%s1 + $0x78] sm:$0xff]
  %29 = vmatprep.subr.mxu0 0.0
  %30 = vmatpush1.xpose.msra.mxu0 %v13
  %31 = vmatprep.subr.mxu0 0.0
  %32 = vmatpush1.xpose.msra.mxu0 %v14
  %33 = vmatprep.subr.mxu0 0.0
  %34 = vmatpush1.xpose.msra.mxu0 %v15
  %35 = vmatprep.subr.mxu0 0.0
  %36 = vmatpush1.xpose.msra.mxu0 %v16
  %37 = vmatprep.subr.mxu0 0.0
  %38 = vmatpush1.xpose.msra.mxu0 %v17
  %39 = vmatprep.subr.mxu0 0.0
  %40 = vmatpush1.xpose.msra.mxu0 %v18
  %41 = vmatprep.subr.mxu0 0.0
  %42 = vmatpush1.xpose.msra.mxu0 %v19
  %43 = vmatprep.subr.mxu0 0.0
  %44 = vmatpush1.xpose.msra.mxu0 %v20
  %45 = vmatprep.subr.mxu0 0.0
  %46 = vmatpush1.xpose.msra.mxu0 %v21
  %47 = vmatprep.subr.mxu0 0.0
  %48 = vmatpush1.xpose.msra.mxu0 %v22
  %49 = vmatprep.subr.mxu0 0.0
  %50 = vmatpush1.xpose.msra.mxu0 %v23
  %51 = vmatprep.subr.mxu0 0.0
  %52 = vmatpush1.xpose.msra.mxu0 %v24
  %53 = vmatprep.subr.mxu0 0.0
  %54 = vmatpush1.xpose.msra.mxu0 %v25
  %55 = vmatprep.subr.mxu0 0.0
  %56 = vmatpush1.xpose.msra.mxu0 %v26
  %57 = vmatprep.subr.mxu0 0.0
  %58 = vmatpush1.xpose.msra.mxu0 %v27
  %59 = vmatprep.subr.mxu0 0.0
  %60 = vmatpush1.xpose.msra.mxu0 %v28
  %61 = vmatprep.subr.mxu0 0.0
  %62 = vmatpush1.xpose.msra.mxu0 0.0
  %63 = vmatprep.subr.mxu0 0.0
  %64 = vmatpush1.xpose.msra.mxu0 0.0
  %65 = vmatprep.subr.mxu0 0.0
  %66 = vmatpush1.xpose.msra.mxu0 0.0
  %67 = vmatprep.subr.mxu0 0.0
  %68 = vmatpush1.xpose.msra.mxu0 0.0
  %69 = vmatprep.subr.mxu0 0.0
  %70 = vmatpush1.xpose.msra.mxu0 0.0
  %71 = vmatprep.subr.mxu0 0.0
  %72 = vmatpush1.xpose.msra.mxu0 0.0
  %73 = vmatprep.subr.mxu0 0.0
  %74 = vmatpush1.xpose.msra.mxu0 0.0
  %75 = vmatprep.subr.mxu0 0.0
  %76 = vmatpush1.xpose.msra.mxu0 0.0
  %77 = vmatprep.subr.mxu0 0.0
  %78 = vmatpush1.xpose.msra.mxu0 0.0
  %79 = vmatprep.subr.mxu0 0.0
  %80 = vmatpush1.xpose.msra.mxu0 0.0
  %81 = vmatprep.subr.mxu0 0.0
  %82 = vmatpush1.xpose.msra.mxu0 0.0
  %83 = vmatprep.subr.mxu0 0.0
  %84 = vmatpush1.xpose.msra.mxu0 0.0
  %85 = vmatprep.subr.mxu0 0.0
  %86 = vmatpush1.xpose.msra.mxu0 0.0
  %87 = vmatprep.subr.mxu0 0.0
  %88 = vmatpush1.xpose.msra.mxu0 0.0
  %89 = vmatprep.subr.mxu0 0.0
  %90 = vmatpush1.xpose.msra.mxu0 0.0
  %91 = vmatprep.subr.mxu0 0.0
  %92 = vmatpush1.xpose.msra.mxu0 0.0
  %93 = vmatprep.mubr.f32.mxu0 0.0
  %94 = vmatmul.mubr.f32.gmra.mrb[0].mxu0 %v11
  %v95 = vpop.f32.mrb[0].mxu0
  %v96 = vadd.f32 0.0, %v95
  %v97 = vpop.f32.mrb[0].mxu0
  %98 = vmatprep.mubr.f32.mxu0 0.0
  %99 = vmatmul.mubr.f32.gmra.mrb[0].mxu0 %v12
  %v100 = vpop.f32.mrb[0].mxu0
  %v101 = vadd.f32 0.0, %v100
  %v102 = vpop.f32.mrb[0].mxu0
  %103 = vdwg.mxu0
  %104 = vst [vmem:[%s2] sm:$0xff] %v96
  %105 = vst [vmem:[%s2 + $0x8] sm:$0xff] %v101
  // Predicated region
  $region10: #{scmogcn_forward.5} parent=0 // pred_check
    _
  $region11: #{scmogcn_forward.5} parent=0 // pred_check_branch
    %107 = sbr.rel (0) target = $region13
  $region12: #{scmogcn_forward.5} parent=0 // pred_region
    _
  $region13: #{scmogcn_forward.5} parent=0 // pred_fallthru
    _
  // Predicated region
  $region14: #{scmogcn_forward.5} parent=0 // pred_check
    _
  $region15: #{scmogcn_forward.5} parent=0 // pred_check_branch
    %109 = sbr.rel (0) target = $region17
  $region16: #{scmogcn_forward.5} parent=0 // pred_region
    _
  $region17: #{scmogcn_forward.5} parent=0 // pred_fallthru
    _

// kernel: scmogcn_forward.3
$region0: #{scmogcn_forward.3}
  #allocation0 [shape = 'u32[]', space=smem, size = 0x4, offset = 0x4, fixed_abs, tag = 'smem constant byte address 0x4 - core index']
  #allocation1 [shape = 'u32[144,128]{1,0:T(1,128)}', space=vmem, size = 0x12000, scoped, tag = 'internal scratch']
  %s0 = inlined_call_operand.vmem [shape: f32[16,32], index: 0, kind: input, shape index: {}]
  %s1 = inlined_call_operand.vmem [shape: f32[32,64], index: 1, kind: input, shape index: {}]
  %s2 = inlined_call_operand.vmem [shape: f32[1,64], index: 2, kind: input, shape index: {}]
  %s3 = inlined_call_operand.vmem [shape: f32[64,128], index: 3, kind: input, shape index: {}]
  %s4 = inlined_call_operand.vmem [shape: f32[1,128], index: 4, kind: input, shape index: {}]
  %s5 = inlined_call_operand.vmem [shape: f32[16,128], index: 5, kind: output, shape index: {}]
  %s6 = sld [smem:[#allocation0]]
  $region30: #{scmogcn_forward.3} parent=0
    _
  %s8 = ssub.s32 1, %s6
  %s9 = scalar_select 0, %s8, %s6
  // Predicated region
  $region2: #{scmogcn_forward.3} parent=0 // pred_check
    _
  $region3: #{scmogcn_forward.3} parent=0 // pred_check_branch
    %11 = sbr.rel (0) target = $region5
  $region4: #{scmogcn_forward.3} parent=0 // pred_region
    _
  $region5: #{scmogcn_forward.3} parent=0 // pred_fallthru
    _
  // Predicated region
  $region6: #{scmogcn_forward.3} parent=0 // pred_check
    _
  $region7: #{scmogcn_forward.3} parent=0 // pred_check_branch
    %13 = sbr.rel (0) target = $region9
  $region8: #{scmogcn_forward.3} parent=0 // pred_region
    _
  $region9: #{scmogcn_forward.3} parent=0 // pred_fallthru
    _
  // Predicated region
  $region10: #{scmogcn_forward.3} parent=0 // pred_check
    _
  $region11: #{scmogcn_forward.3} parent=0 // pred_check_branch
    %15 = sbr.rel (0) target = $region13
  $region12: #{scmogcn_forward.3} parent=0 // pred_region
    _
  $region13: #{scmogcn_forward.3} parent=0 // pred_fallthru
    _
  // Predicated region
  $region14: #{scmogcn_forward.3} parent=0 // pred_check
    _
  $region15: #{scmogcn_forward.3} parent=0 // pred_check_branch
    %17 = sbr.rel (0) target = $region17
  $region16: #{scmogcn_forward.3} parent=0 // pred_region
    _
  $region17: #{scmogcn_forward.3} parent=0 // pred_fallthru
    _
  // Predicated region
  $region18: #{scmogcn_forward.3} parent=0 // pred_check
    _
  $region19: #{scmogcn_forward.3} parent=0 // pred_check_branch
    %19 = sbr.rel (0) target = $region21
  $region20: #{scmogcn_forward.3} parent=0 // pred_region
    _
  $region21: #{scmogcn_forward.3} parent=0 // pred_fallthru
    _
  %v20 = vld [vmem:[%s0] sm:$0xff]
  %v21 = vld [vmem:[%s0 + $0x8] sm:$0xff]
  %v22 = vld [vmem:[%s1] sm:$0xff]
  %v23 = vld [vmem:[%s1 + $0x8] sm:$0xff]
  %v24 = vld [vmem:[%s1 + $0x10] sm:$0xff]
  %v25 = vld [vmem:[%s1 + $0x18] sm:$0xff]
  %v26 = vld [vmem:[%s2] sm:$0x1]
  %v28 = vlaneseq
  %v29 = vshrl.u32 %v28, 7
  %v30 = vsub.s32 0, %v29
  %v31 = vrot.slane %v26, %v30
  %vm33 = vcmask 261120
  %v35 = vsel %vm33, %v20, 0
  %v38 = vsel %vm33, %v21, 0
  %40 = vmatprep.subr.mxu0 0.0
  %41 = vmatpush1.msra.mxu0 %v22
  %42 = vmatprep.subr.mxu0 0.0
  %43 = vmatpush1.msra.mxu0 %v23
  %44 = vmatprep.subr.mxu0 0.0
  %45 = vmatpush1.msra.mxu0 %v24
  %46 = vmatprep.subr.mxu0 0.0
  %47 = vmatpush1.msra.mxu0 %v25
  %48 = vmatprep.subr.mxu0 0.0
  %49 = vmatpush1.msra.mxu0 0.0
  %50 = vmatprep.subr.mxu0 0.0
  %51 = vmatpush1.msra.mxu0 0.0
  %52 = vmatprep.subr.mxu0 0.0
  %53 = vmatpush1.msra.mxu0 0.0
  %54 = vmatprep.subr.mxu0 0.0
  %55 = vmatpush1.msra.mxu0 0.0
  %56 = vmatprep.subr.mxu0 0.0
  %57 = vmatpush1.msra.mxu0 0.0
  %58 = vmatprep.subr.mxu0 0.0
  %59 = vmatpush1.msra.mxu0 0.0
  %60 = vmatprep.subr.mxu0 0.0
  %61 = vmatpush1.msra.mxu0 0.0
  %62 = vmatprep.subr.mxu0 0.0
  %63 = vmatpush1.msra.mxu0 0.0
  %64 = vmatprep.subr.mxu0 0.0
  %65 = vmatpush1.msra.mxu0 0.0
  %66 = vmatprep.subr.mxu0 0.0
  %67 = vmatpush1.msra.mxu0 0.0
  %68 = vmatprep.subr.mxu0 0.0
  %69 = vmatpush1.msra.mxu0 0.0
  %70 = vmatprep.subr.mxu0 0.0
  %71 = vmatpush1.msra.mxu0 0.0
  %72 = vmatprep.subr.mxu0 0.0
  %73 = vmatpush1.msra.mxu0 0.0
  %74 = vmatprep.subr.mxu0 0.0
  %75 = vmatpush1.msra.mxu0 0.0
  %76 = vmatprep.subr.mxu0 0.0
  %77 = vmatpush1.msra.mxu0 0.0
  %78 = vmatprep.subr.mxu0 0.0
  %79 = vmatpush1.msra.mxu0 0.0
  %80 = vmatprep.subr.mxu0 0.0
  %81 = vmatpush1.msra.mxu0 0.0
  %82 = vmatprep.subr.mxu0 0.0
  %83 = vmatpush1.msra.mxu0 0.0
  %84 = vmatprep.subr.mxu0 0.0
  %85 = vmatpush1.msra.mxu0 0.0
  %86 = vmatprep.subr.mxu0 0.0
  %87 = vmatpush1.msra.mxu0 0.0
  %88 = vmatprep.subr.mxu0 0.0
  %89 = vmatpush1.msra.mxu0 0.0
  %90 = vmatprep.subr.mxu0 0.0
  %91 = vmatpush1.msra.mxu0 0.0
  %92 = vmatprep.subr.mxu0 0.0
  %93 = vmatpush1.msra.mxu0 0.0
  %94 = vmatprep.subr.mxu0 0.0
  %95 = vmatpush1.msra.mxu0 0.0
  %96 = vmatprep.subr.mxu0 0.0
  %97 = vmatpush1.msra.mxu0 0.0
  %98 = vmatprep.subr.mxu0 0.0
  %99 = vmatpush1.msra.mxu0 0.0
  %100 = vmatprep.subr.mxu0 0.0
  %101 = vmatpush1.msra.mxu0 0.0
  %102 = vmatprep.subr.mxu0 0.0
  %103 = vmatpush1.msra.mxu0 0.0
  %104 = vmatprep.mubr.f32.mxu0 0.0
  %105 = vmatmul.mubr.f32.gmra.mrb[0].mxu0 %v35
  %v106 = vpop.f32.mrb[0].mxu0
  %v107 = vadd.f32 %v31, %v106
  %v108 = vpop.f32.mrb[0].mxu0
  %109 = vmatprep.mubr.f32.mxu0 0.0
  %110 = vmatmul.mubr.f32.gmra.mrb[0].mxu0 %v38
  %v111 = vpop.f32.mrb[0].mxu0
  %v112 = vadd.f32 %v31, %v111
  %v113 = vpop.f32.mrb[0].mxu0
  %114 = vdwg.mxu0
  %v115 = vmul.f32 %v107, 0.5
  %v116 = vmul.f32 %v112, 0.5
  %v117 = vmul.f32 %v107, 0.70710677
  %v118 = vmul.f32 %v112, 0.70710677
  %v119 = verf.f32.pop %v117
  %v120 = verf.f32.pop %v118
  %v121 = vadd.f32 %v119, 1.0
  %v122 = vadd.f32 %v120, 1.0
  %v123 = vmul.f32 %v115, %v121
  %v124 = vmul.f32 %v116, %v122
  %v125 = vld [vmem:[%s3] sm:$0xff]
  %v126 = vld [vmem:[%s3 + $0x8] sm:$0xff]
  %v127 = vld [vmem:[%s3 + $0x10] sm:$0xff]
  %v128 = vld [vmem:[%s3 + $0x18] sm:$0xff]
  %v129 = vld [vmem:[%s3 + $0x20] sm:$0xff]
  %v130 = vld [vmem:[%s3 + $0x28] sm:$0xff]
  %v131 = vld [vmem:[%s3 + $0x30] sm:$0xff]
  %v132 = vld [vmem:[%s3 + $0x38] sm:$0xff]
  %v133 = vld [vmem:[%s4] sm:$0x1]
  %v135 = vlaneseq
  %v136 = vshrl.u32 %v135, 7
  %v137 = vsub.s32 0, %v136
  %v138 = vrot.slane %v133, %v137
  %vm140 = vcmask 523264
  %v142 = vsel %vm140, %v123, 0
  %v145 = vsel %vm140, %v124, 0
  %147 = vmatprep.subr.mxu0 0.0
  %148 = vmatpush1.msra.mxu0 %v125
  %149 = vmatprep.subr.mxu0 0.0
  %150 = vmatpush1.msra.mxu0 %v126
  %151 = vmatprep.subr.mxu0 0.0
  %152 = vmatpush1.msra.mxu0 %v127
  %153 = vmatprep.subr.mxu0 0.0
  %154 = vmatpush1.msra.mxu0 %v128
  %155 = vmatprep.subr.mxu0 0.0
  %156 = vmatpush1.msra.mxu0 %v129
  %157 = vmatprep.subr.mxu0 0.0
  %158 = vmatpush1.msra.mxu0 %v130
  %159 = vmatprep.subr.mxu0 0.0
  %160 = vmatpush1.msra.mxu0 %v131
  %161 = vmatprep.subr.mxu0 0.0
  %162 = vmatpush1.msra.mxu0 %v132
  %163 = vmatprep.subr.mxu0 0.0
  %164 = vmatpush1.msra.mxu0 0.0
  %165 = vmatprep.subr.mxu0 0.0
  %166 = vmatpush1.msra.mxu0 0.0
  %167 = vmatprep.subr.mxu0 0.0
  %168 = vmatpush1.msra.mxu0 0.0
  %169 = vmatprep.subr.mxu0 0.0
  %170 = vmatpush1.msra.mxu0 0.0
  %171 = vmatprep.subr.mxu0 0.0
  %172 = vmatpush1.msra.mxu0 0.0
  %173 = vmatprep.subr.mxu0 0.0
  %174 = vmatpush1.msra.mxu0 0.0
  %175 = vmatprep.subr.mxu0 0.0
  %176 = vmatpush1.msra.mxu0 0.0
  %177 = vmatprep.subr.mxu0 0.0
  %178 = vmatpush1.msra.mxu0 0.0
  %179 = vmatprep.subr.mxu0 0.0
  %180 = vmatpush1.msra.mxu0 0.0
  %181 = vmatprep.subr.mxu0 0.0
  %182 = vmatpush1.msra.mxu0 0.0
  %183 = vmatprep.subr.mxu0 0.0
  %184 = vmatpush1.msra.mxu0 0.0
  %185 = vmatprep.subr.mxu0 0.0
  %186 = vmatpush1.msra.mxu0 0.0
  %187 = vmatprep.subr.mxu0 0.0
  %188 = vmatpush1.msra.mxu0 0.0
  %189 = vmatprep.subr.mxu0 0.0
  %190 = vmatpush1.msra.mxu0 0.0
  %191 = vmatprep.subr.mxu0 0.0
  %192 = vmatpush1.msra.mxu0 0.0
  %193 = vmatprep.subr.mxu0 0.0
  %194 = vmatpush1.msra.mxu0 0.0
  %195 = vmatprep.subr.mxu0 0.0
  %196 = vmatpush1.msra.mxu0 0.0
  %197 = vmatprep.subr.mxu0 0.0
  %198 = vmatpush1.msra.mxu0 0.0
  %199 = vmatprep.subr.mxu0 0.0
  %200 = vmatpush1.msra.mxu0 0.0
  %201 = vmatprep.subr.mxu0 0.0
  %202 = vmatpush1.msra.mxu0 0.0
  %203 = vmatprep.subr.mxu0 0.0
  %204 = vmatpush1.msra.mxu0 0.0
  %205 = vmatprep.subr.mxu0 0.0
  %206 = vmatpush1.msra.mxu0 0.0
  %207 = vmatprep.subr.mxu0 0.0
  %208 = vmatpush1.msra.mxu0 0.0
  %209 = vmatprep.subr.mxu0 0.0
  %210 = vmatpush1.msra.mxu0 0.0
  %211 = vmatprep.mubr.f32.mxu0 0.0
  %212 = vmatmul.mubr.f32.gmra.mrb[0].mxu0 %v142
  %v213 = vpop.f32.mrb[0].mxu0
  %v214 = vadd.f32 %v138, %v213
  %v215 = vpop.f32.mrb[0].mxu0
  %216 = vmatprep.mubr.f32.mxu0 0.0
  %217 = vmatmul.mubr.f32.gmra.mrb[0].mxu0 %v145
  %v218 = vpop.f32.mrb[0].mxu0
  %v219 = vadd.f32 %v138, %v218
  %v220 = vpop.f32.mrb[0].mxu0
  %221 = vdwg.mxu0
  %v222 = vmul.f32 %v214, %v214
  %v223 = vmul.f32 %v219, %v219
  %224 = vadd.xlane.f32.xlu0 %v222
  %v225 = vpop.xlane.xlu0 %224
  %226 = vadd.xlane.f32.xlu0 %v223
  %v227 = vpop.xlane.xlu0 %226
  %v228 = vrsqrt.pop %v225
  %v229 = vrsqrt.pop %v227
  %v230 = vmul.f32 %v228, 2.7182817
  %v231 = vmul.f32 %v229, 2.7182817
  %v232 = vmul.f32 %v214, %v230
  %v233 = vmul.f32 %v219, %v231
  %234 = vst [vmem:[%s5] sm:$0xff] %v232
  %235 = vst [vmem:[%s5 + $0x8] sm:$0xff] %v233
  // Predicated region
  $region22: #{scmogcn_forward.3} parent=0 // pred_check
    _
  $region23: #{scmogcn_forward.3} parent=0 // pred_check_branch
    %237 = sbr.rel (0) target = $region25
  $region24: #{scmogcn_forward.3} parent=0 // pred_region
    _
  $region25: #{scmogcn_forward.3} parent=0 // pred_fallthru
    _
  // Predicated region
  $region26: #{scmogcn_forward.3} parent=0 // pred_check
    _
  $region27: #{scmogcn_forward.3} parent=0 // pred_check_branch
    %239 = sbr.rel (0) target = $region29
  $region28: #{scmogcn_forward.3} parent=0 // pred_region
    _
  $region29: #{scmogcn_forward.3} parent=0 // pred_fallthru
    _

// kernel: scmogcn_forward.4
$region0: #{scmogcn_forward.4}
  #allocation0 [shape = 'u32[]', space=smem, size = 0x4, offset = 0x4, fixed_abs, tag = 'smem constant byte address 0x4 - core index']
  #allocation1 [shape = 'u32[144,128]{1,0:T(1,128)}', space=vmem, size = 0x12000, scoped, tag = 'internal scratch']
  %s0 = inlined_call_operand.vmem [shape: f32[128,48], index: 0, kind: input, shape index: {}]
  %s1 = inlined_call_operand.vmem [shape: f32[48,64], index: 1, kind: input, shape index: {}]
  %s2 = inlined_call_operand.vmem [shape: f32[1,64], index: 2, kind: input, shape index: {}]
  %s3 = inlined_call_operand.vmem [shape: f32[64,128], index: 3, kind: input, shape index: {}]
  %s4 = inlined_call_operand.vmem [shape: f32[1,128], index: 4, kind: input, shape index: {}]
  %s5 = inlined_call_operand.vmem [shape: f32[128,128], index: 5, kind: output, shape index: {}]
  %s6 = sld [smem:[#allocation0]]
  $region30: #{scmogcn_forward.4} parent=0
    _
  %s8 = ssub.s32 1, %s6
  %s9 = scalar_select 0, %s8, %s6
  // Predicated region
  $region2: #{scmogcn_forward.4} parent=0 // pred_check
    _
  $region3: #{scmogcn_forward.4} parent=0 // pred_check_branch
    %11 = sbr.rel (0) target = $region5
  $region4: #{scmogcn_forward.4} parent=0 // pred_region
    _
  $region5: #{scmogcn_forward.4} parent=0 // pred_fallthru
    _
  // Predicated region
  $region6: #{scmogcn_forward.4} parent=0 // pred_check
    _
  $region7: #{scmogcn_forward.4} parent=0 // pred_check_branch
    %13 = sbr.rel (0) target = $region9
  $region8: #{scmogcn_forward.4} parent=0 // pred_region
    _
  $region9: #{scmogcn_forward.4} parent=0 // pred_fallthru
    _
  // Predicated region
  $region10: #{scmogcn_forward.4} parent=0 // pred_check
    _
  $region11: #{scmogcn_forward.4} parent=0 // pred_check_branch
    %15 = sbr.rel (0) target = $region13
  $region12: #{scmogcn_forward.4} parent=0 // pred_region
    _
  $region13: #{scmogcn_forward.4} parent=0 // pred_fallthru
    _
  // Predicated region
  $region14: #{scmogcn_forward.4} parent=0 // pred_check
    _
  $region15: #{scmogcn_forward.4} parent=0 // pred_check_branch
    %17 = sbr.rel (0) target = $region17
  $region16: #{scmogcn_forward.4} parent=0 // pred_region
    _
  $region17: #{scmogcn_forward.4} parent=0 // pred_fallthru
    _
  // Predicated region
  $region18: #{scmogcn_forward.4} parent=0 // pred_check
    _
  $region19: #{scmogcn_forward.4} parent=0 // pred_check_branch
    %19 = sbr.rel (0) target = $region21
  $region20: #{scmogcn_forward.4} parent=0 // pred_region
    _
  $region21: #{scmogcn_forward.4} parent=0 // pred_fallthru
    _
  %v20 = vld [vmem:[%s0] sm:$0xff]
  %v21 = vld [vmem:[%s0 + $0x8] sm:$0xff]
  %v22 = vld [vmem:[%s0 + $0x10] sm:$0xff]
  %v23 = vld [vmem:[%s0 + $0x18] sm:$0xff]
  %v24 = vld [vmem:[%s0 + $0x20] sm:$0xff]
  %v25 = vld [vmem:[%s0 + $0x28] sm:$0xff]
  %v26 = vld [vmem:[%s0 + $0x30] sm:$0xff]
  %v27 = vld [vmem:[%s0 + $0x38] sm:$0xff]
  %v28 = vld [vmem:[%s0 + $0x40] sm:$0xff]
  %v29 = vld [vmem:[%s0 + $0x48] sm:$0xff]
  %v30 = vld [vmem:[%s0 + $0x50] sm:$0xff]
  %v31 = vld [vmem:[%s0 + $0x58] sm:$0xff]
  %v32 = vld [vmem:[%s0 + $0x60] sm:$0xff]
  %v33 = vld [vmem:[%s0 + $0x68] sm:$0xff]
  %v34 = vld [vmem:[%s0 + $0x70] sm:$0xff]
  %v35 = vld [vmem:[%s0 + $0x78] sm:$0xff]
  %v36 = vld [vmem:[%s1] sm:$0xff]
  %v37 = vld [vmem:[%s1 + $0x8] sm:$0xff]
  %v38 = vld [vmem:[%s1 + $0x10] sm:$0xff]
  %v39 = vld [vmem:[%s1 + $0x18] sm:$0xff]
  %v40 = vld [vmem:[%s1 + $0x20] sm:$0xff]
  %v41 = vld [vmem:[%s1 + $0x28] sm:$0xff]
  %v42 = vld [vmem:[%s2] sm:$0x1]
  %v44 = vlaneseq
  %v45 = vshrl.u32 %v44, 7
  %v46 = vsub.s32 0, %v45
  %v47 = vrot.slane %v42, %v46
  %vm49 = vcmask 392192
  %v51 = vsel %vm49, %v20, 0
  %v54 = vsel %vm49, %v21, 0
  %v57 = vsel %vm49, %v22, 0
  %v60 = vsel %vm49, %v23, 0
  %v63 = vsel %vm49, %v24, 0
  %v66 = vsel %vm49, %v25, 0
  %v69 = vsel %vm49, %v26, 0
  %v72 = vsel %vm49, %v27, 0
  %v75 = vsel %vm49, %v28, 0
  %v78 = vsel %vm49, %v29, 0
  %v81 = vsel %vm49, %v30, 0
  %v84 = vsel %vm49, %v31, 0
  %v87 = vsel %vm49, %v32, 0
  %v90 = vsel %vm49, %v33, 0
  %v93 = vsel %vm49, %v34, 0
  %v96 = vsel %vm49, %v35, 0
  %98 = vmatprep.subr.mxu0 0.0
  %99 = vmatpush1.msra.mxu0 %v36
  %100 = vmatprep.subr.mxu0 0.0
  %101 = vmatpush1.msra.mxu0 %v37
  %102 = vmatprep.subr.mxu0 0.0
  %103 = vmatpush1.msra.mxu0 %v38
  %104 = vmatprep.subr.mxu0 0.0
  %105 = vmatpush1.msra.mxu0 %v39
  %106 = vmatprep.subr.mxu0 0.0
  %107 = vmatpush1.msra.mxu0 %v40
  %108 = vmatprep.subr.mxu0 0.0
  %109 = vmatpush1.msra.mxu0 %v41
  %110 = vmatprep.subr.mxu0 0.0
  %111 = vmatpush1.msra.mxu0 0.0
  %112 = vmatprep.subr.mxu0 0.0
  %113 = vmatpush1.msra.mxu0 0.0
  %114 = vmatprep.subr.mxu0 0.0
  %115 = vmatpush1.msra.mxu0 0.0
  %116 = vmatprep.subr.mxu0 0.0
  %117 = vmatpush1.msra.mxu0 0.0
  %118 = vmatprep.subr.mxu0 0.0
  %119 = vmatpush1.msra.mxu0 0.0
  %120 = vmatprep.subr.mxu0 0.0
  %121 = vmatpush1.msra.mxu0 0.0
  %122 = vmatprep.subr.mxu0 0.0
  %123 = vmatpush1.msra.mxu0 0.0
  %124 = vmatprep.subr.mxu0 0.0
  %125 = vmatpush1.msra.mxu0 0.0
  %126 = vmatprep.subr.mxu0 0.0
  %127 = vmatpush1.msra.mxu0 0.0
  %128 = vmatprep.subr.mxu0 0.0
  %129 = vmatpush1.msra.mxu0 0.0
  %130 = vmatprep.subr.mxu0 0.0
  %131 = vmatpush1.msra.mxu0 0.0
  %132 = vmatprep.subr.mxu0 0.0
  %133 = vmatpush1.msra.mxu0 0.0
  %134 = vmatprep.subr.mxu0 0.0
  %135 = vmatpush1.msra.mxu0 0.0
  %136 = vmatprep.subr.mxu0 0.0
  %137 = vmatpush1.msra.mxu0 0.0
  %138 = vmatprep.subr.mxu0 0.0
  %139 = vmatpush1.msra.mxu0 0.0
  %140 = vmatprep.subr.mxu0 0.0
  %141 = vmatpush1.msra.mxu0 0.0
  %142 = vmatprep.subr.mxu0 0.0
  %143 = vmatpush1.msra.mxu0 0.0
  %144 = vmatprep.subr.mxu0 0.0
  %145 = vmatpush1.msra.mxu0 0.0
  %146 = vmatprep.subr.mxu0 0.0
  %147 = vmatpush1.msra.mxu0 0.0
  %148 = vmatprep.subr.mxu0 0.0
  %149 = vmatpush1.msra.mxu0 0.0
  %150 = vmatprep.subr.mxu0 0.0
  %151 = vmatpush1.msra.mxu0 0.0
  %152 = vmatprep.subr.mxu0 0.0
  %153 = vmatpush1.msra.mxu0 0.0
  %154 = vmatprep.subr.mxu0 0.0
  %155 = vmatpush1.msra.mxu0 0.0
  %156 = vmatprep.subr.mxu0 0.0
  %157 = vmatpush1.msra.mxu0 0.0
  %158 = vmatprep.subr.mxu0 0.0
  %159 = vmatpush1.msra.mxu0 0.0
  %160 = vmatprep.subr.mxu0 0.0
  %161 = vmatpush1.msra.mxu0 0.0
  %162 = vmatprep.mubr.f32.mxu0 0.0
  %163 = vmatmul.mubr.f32.gmra.mrb[0].mxu0 %v51
  %v164 = vpop.f32.mrb[0].mxu0
  %v165 = vadd.f32 %v47, %v164
  %v166 = vpop.f32.mrb[0].mxu0
  %167 = vmatprep.mubr.f32.mxu0 0.0
  %168 = vmatmul.mubr.f32.gmra.mrb[0].mxu0 %v54
  %v169 = vpop.f32.mrb[0].mxu0
  %v170 = vadd.f32 %v47, %v169
  %v171 = vpop.f32.mrb[0].mxu0
  %172 = vmatprep.mubr.f32.mxu0 0.0
  %173 = vmatmul.mubr.f32.gmra.mrb[0].mxu0 %v57
  %v174 = vpop.f32.mrb[0].mxu0
  %v175 = vadd.f32 %v47, %v174
  %v176 = vpop.f32.mrb[0].mxu0
  %177 = vmatprep.mubr.f32.mxu0 0.0
  %178 = vmatmul.mubr.f32.gmra.mrb[0].mxu0 %v60
  %v179 = vpop.f32.mrb[0].mxu0
  %v180 = vadd.f32 %v47, %v179
  %v181 = vpop.f32.mrb[0].mxu0
  %182 = vmatprep.mubr.f32.mxu0 0.0
  %183 = vmatmul.mubr.f32.gmra.mrb[0].mxu0 %v63
  %v184 = vpop.f32.mrb[0].mxu0
  %v185 = vadd.f32 %v47, %v184
  %v186 = vpop.f32.mrb[0].mxu0
  %187 = vmatprep.mubr.f32.mxu0 0.0
  %188 = vmatmul.mubr.f32.gmra.mrb[0].mxu0 %v66
  %v189 = vpop.f32.mrb[0].mxu0
  %v190 = vadd.f32 %v47, %v189
  %v191 = vpop.f32.mrb[0].mxu0
  %192 = vmatprep.mubr.f32.mxu0 0.0
  %193 = vmatmul.mubr.f32.gmra.mrb[0].mxu0 %v69
  %v194 = vpop.f32.mrb[0].mxu0
  %v195 = vadd.f32 %v47, %v194
  %v196 = vpop.f32.mrb[0].mxu0
  %197 = vmatprep.mubr.f32.mxu0 0.0
  %198 = vmatmul.mubr.f32.gmra.mrb[0].mxu0 %v72
  %v199 = vpop.f32.mrb[0].mxu0
  %v200 = vadd.f32 %v47, %v199
  %v201 = vpop.f32.mrb[0].mxu0
  %202 = vmatprep.mubr.f32.mxu0 0.0
  %203 = vmatmul.mubr.f32.gmra.mrb[0].mxu0 %v75
  %v204 = vpop.f32.mrb[0].mxu0
  %v205 = vadd.f32 %v47, %v204
  %v206 = vpop.f32.mrb[0].mxu0
  %207 = vmatprep.mubr.f32.mxu0 0.0
  %208 = vmatmul.mubr.f32.gmra.mrb[0].mxu0 %v78
  %v209 = vpop.f32.mrb[0].mxu0
  %v210 = vadd.f32 %v47, %v209
  %v211 = vpop.f32.mrb[0].mxu0
  %212 = vmatprep.mubr.f32.mxu0 0.0
  %213 = vmatmul.mubr.f32.gmra.mrb[0].mxu0 %v81
  %v214 = vpop.f32.mrb[0].mxu0
  %v215 = vadd.f32 %v47, %v214
  %v216 = vpop.f32.mrb[0].mxu0
  %217 = vmatprep.mubr.f32.mxu0 0.0
  %218 = vmatmul.mubr.f32.gmra.mrb[0].mxu0 %v84
  %v219 = vpop.f32.mrb[0].mxu0
  %v220 = vadd.f32 %v47, %v219
  %v221 = vpop.f32.mrb[0].mxu0
  %222 = vmatprep.mubr.f32.mxu0 0.0
  %223 = vmatmul.mubr.f32.gmra.mrb[0].mxu0 %v87
  %v224 = vpop.f32.mrb[0].mxu0
  %v225 = vadd.f32 %v47, %v224
  %v226 = vpop.f32.mrb[0].mxu0
  %227 = vmatprep.mubr.f32.mxu0 0.0
  %228 = vmatmul.mubr.f32.gmra.mrb[0].mxu0 %v90
  %v229 = vpop.f32.mrb[0].mxu0
  %v230 = vadd.f32 %v47, %v229
  %v231 = vpop.f32.mrb[0].mxu0
  %232 = vmatprep.mubr.f32.mxu0 0.0
  %233 = vmatmul.mubr.f32.gmra.mrb[0].mxu0 %v93
  %v234 = vpop.f32.mrb[0].mxu0
  %v235 = vadd.f32 %v47, %v234
  %v236 = vpop.f32.mrb[0].mxu0
  %237 = vmatprep.mubr.f32.mxu0 0.0
  %238 = vmatmul.mubr.f32.gmra.mrb[0].mxu0 %v96
  %v239 = vpop.f32.mrb[0].mxu0
  %v240 = vadd.f32 %v47, %v239
  %v241 = vpop.f32.mrb[0].mxu0
  %242 = vdwg.mxu0
  %v243 = vmul.f32 %v165, 0.5
  %v244 = vmul.f32 %v170, 0.5
  %v245 = vmul.f32 %v175, 0.5
  %v246 = vmul.f32 %v180, 0.5
  %v247 = vmul.f32 %v185, 0.5
  %v248 = vmul.f32 %v190, 0.5
  %v249 = vmul.f32 %v195, 0.5
  %v250 = vmul.f32 %v200, 0.5
  %v251 = vmul.f32 %v205, 0.5
  %v252 = vmul.f32 %v210, 0.5
  %v253 = vmul.f32 %v215, 0.5
  %v254 = vmul.f32 %v220, 0.5
  %v255 = vmul.f32 %v225, 0.5
  %v256 = vmul.f32 %v230, 0.5
  %v257 = vmul.f32 %v235, 0.5
  %v258 = vmul.f32 %v240, 0.5
  %v259 = vmul.f32 %v165, 0.70710677
  %v260 = vmul.f32 %v170, 0.70710677
  %v261 = vmul.f32 %v175, 0.70710677
  %v262 = vmul.f32 %v180, 0.70710677
  %v263 = vmul.f32 %v185, 0.70710677
  %v264 = vmul.f32 %v190, 0.70710677
  %v265 = vmul.f32 %v195, 0.70710677
  %v266 = vmul.f32 %v200, 0.70710677
  %v267 = vmul.f32 %v205, 0.70710677
  %v268 = vmul.f32 %v210, 0.70710677
  %v269 = vmul.f32 %v215, 0.70710677
  %v270 = vmul.f32 %v220, 0.70710677
  %v271 = vmul.f32 %v225, 0.70710677
  %v272 = vmul.f32 %v230, 0.70710677
  %v273 = vmul.f32 %v235, 0.70710677
  %v274 = vmul.f32 %v240, 0.70710677
  %v275 = verf.f32.pop %v259
  %v276 = verf.f32.pop %v260
  %v277 = verf.f32.pop %v261
  %v278 = verf.f32.pop %v262
  %v279 = verf.f32.pop %v263
  %v280 = verf.f32.pop %v264
  %v281 = verf.f32.pop %v265
  %v282 = verf.f32.pop %v266
  %v283 = verf.f32.pop %v267
  %v284 = verf.f32.pop %v268
  %v285 = verf.f32.pop %v269
  %v286 = verf.f32.pop %v270
  %v287 = verf.f32.pop %v271
  %v288 = verf.f32.pop %v272
  %v289 = verf.f32.pop %v273
  %v290 = verf.f32.pop %v274
  %v291 = vadd.f32 %v275, 1.0
  %v292 = vadd.f32 %v276, 1.0
  %v293 = vadd.f32 %v277, 1.0
  %v294 = vadd.f32 %v278, 1.0
  %v295 = vadd.f32 %v279, 1.0
  %v296 = vadd.f32 %v280, 1.0
  %v297 = vadd.f32 %v281, 1.0
  %v298 = vadd.f32 %v282, 1.0
  %v299 = vadd.f32 %v283, 1.0
  %v300 = vadd.f32 %v284, 1.0
  %v301 = vadd.f32 %v285, 1.0
  %v302 = vadd.f32 %v286, 1.0
  %v303 = vadd.f32 %v287, 1.0
  %v304 = vadd.f32 %v288, 1.0
  %v305 = vadd.f32 %v289, 1.0
  %v306 = vadd.f32 %v290, 1.0
  %v307 = vmul.f32 %v243, %v291
  %v308 = vmul.f32 %v244, %v292
  %v309 = vmul.f32 %v245, %v293
  %v310 = vmul.f32 %v246, %v294
  %v311 = vmul.f32 %v247, %v295
  %v312 = vmul.f32 %v248, %v296
  %v313 = vmul.f32 %v249, %v297
  %v314 = vmul.f32 %v250, %v298
  %v315 = vmul.f32 %v251, %v299
  %v316 = vmul.f32 %v252, %v300
  %v317 = vmul.f32 %v253, %v301
  %v318 = vmul.f32 %v254, %v302
  %v319 = vmul.f32 %v255, %v303
  %v320 = vmul.f32 %v256, %v304
  %v321 = vmul.f32 %v257, %v305
  %v322 = vmul.f32 %v258, %v306
  %v323 = vld [vmem:[%s3] sm:$0xff]
  %v324 = vld [vmem:[%s3 + $0x8] sm:$0xff]
  %v325 = vld [vmem:[%s3 + $0x10] sm:$0xff]
  %v326 = vld [vmem:[%s3 + $0x18] sm:$0xff]
  %v327 = vld [vmem:[%s3 + $0x20] sm:$0xff]
  %v328 = vld [vmem:[%s3 + $0x28] sm:$0xff]
  %v329 = vld [vmem:[%s3 + $0x30] sm:$0xff]
  %v330 = vld [vmem:[%s3 + $0x38] sm:$0xff]
  %v331 = vld [vmem:[%s4] sm:$0x1]
  %v333 = vlaneseq
  %v334 = vshrl.u32 %v333, 7
  %v335 = vsub.s32 0, %v334
  %v336 = vrot.slane %v331, %v335
  %vm338 = vcmask 523264
  %v340 = vsel %vm338, %v307, 0
  %v343 = vsel %vm338, %v308, 0
  %v346 = vsel %vm338, %v309, 0
  %v349 = vsel %vm338, %v310, 0
  %v352 = vsel %vm338, %v311, 0
  %v355 = vsel %vm338, %v312, 0
  %v358 = vsel %vm338, %v313, 0
  %v361 = vsel %vm338, %v314, 0
  %v364 = vsel %vm338, %v315, 0
  %v367 = vsel %vm338, %v316, 0
  %v370 = vsel %vm338, %v317, 0
  %v373 = vsel %vm338, %v318, 0
  %v376 = vsel %vm338, %v319, 0
  %v379 = vsel %vm338, %v320, 0
  %v382 = vsel %vm338, %v321, 0
  %v385 = vsel %vm338, %v322, 0
  %387 = vmatprep.subr.mxu0 0.0
  %388 = vmatpush1.msra.mxu0 %v323
  %389 = vmatprep.subr.mxu0 0.0
  %390 = vmatpush1.msra.mxu0 %v324
  %391 = vmatprep.subr.mxu0 0.0
  %392 = vmatpush1.msra.mxu0 %v325
  %393 = vmatprep.subr.mxu0 0.0
  %394 = vmatpush1.msra.mxu0 %v326
  %395 = vmatprep.subr.mxu0 0.0
  %396 = vmatpush1.msra.mxu0 %v327
  %397 = vmatprep.subr.mxu0 0.0
  %398 = vmatpush1.msra.mxu0 %v328
  %399 = vmatprep.subr.mxu0 0.0
  %400 = vmatpush1.msra.mxu0 %v329
  %401 = vmatprep.subr.mxu0 0.0
  %402 = vmatpush1.msra.mxu0 %v330
  %403 = vmatprep.subr.mxu0 0.0
  %404 = vmatpush1.msra.mxu0 0.0
  %405 = vmatprep.subr.mxu0 0.0
  %406 = vmatpush1.msra.mxu0 0.0
  %407 = vmatprep.subr.mxu0 0.0
  %408 = vmatpush1.msra.mxu0 0.0
  %409 = vmatprep.subr.mxu0 0.0
  %410 = vmatpush1.msra.mxu0 0.0
  %411 = vmatprep.subr.mxu0 0.0
  %412 = vmatpush1.msra.mxu0 0.0
  %413 = vmatprep.subr.mxu0 0.0
  %414 = vmatpush1.msra.mxu0 0.0
  %415 = vmatprep.subr.mxu0 0.0
  %416 = vmatpush1.msra.mxu0 0.0
  %417 = vmatprep.subr.mxu0 0.0
  %418 = vmatpush1.msra.mxu0 0.0
  %419 = vmatprep.subr.mxu0 0.0
  %420 = vmatpush1.msra.mxu0 0.0
  %421 = vmatprep.subr.mxu0 0.0
  %422 = vmatpush1.msra.mxu0 0.0
  %423 = vmatprep.subr.mxu0 0.0
  %424 = vmatpush1.msra.mxu0 0.0
  %425 = vmatprep.subr.mxu0 0.0
  %426 = vmatpush1.msra.mxu0 0.0
  %427 = vmatprep.subr.mxu0 0.0
  %428 = vmatpush1.msra.mxu0 0.0
  %429 = vmatprep.subr.mxu0 0.0
  %430 = vmatpush1.msra.mxu0 0.0
  %431 = vmatprep.subr.mxu0 0.0
  %432 = vmatpush1.msra.mxu0 0.0
  %433 = vmatprep.subr.mxu0 0.0
  %434 = vmatpush1.msra.mxu0 0.0
  %435 = vmatprep.subr.mxu0 0.0
  %436 = vmatpush1.msra.mxu0 0.0
  %437 = vmatprep.subr.mxu0 0.0
  %438 = vmatpush1.msra.mxu0 0.0
  %439 = vmatprep.subr.mxu0 0.0
  %440 = vmatpush1.msra.mxu0 0.0
  %441 = vmatprep.subr.mxu0 0.0
  %442 = vmatpush1.msra.mxu0 0.0
  %443 = vmatprep.subr.mxu0 0.0
  %444 = vmatpush1.msra.mxu0 0.0
  %445 = vmatprep.subr.mxu0 0.0
  %446 = vmatpush1.msra.mxu0 0.0
  %447 = vmatprep.subr.mxu0 0.0
  %448 = vmatpush1.msra.mxu0 0.0
  %449 = vmatprep.subr.mxu0 0.0
  %450 = vmatpush1.msra.mxu0 0.0
  %451 = vmatprep.mubr.f32.mxu0 0.0
  %452 = vmatmul.mubr.f32.gmra.mrb[0].mxu0 %v340
  %v453 = vpop.f32.mrb[0].mxu0
  %v454 = vadd.f32 %v336, %v453
  %v455 = vpop.f32.mrb[0].mxu0
  %456 = vmatprep.mubr.f32.mxu0 0.0
  %457 = vmatmul.mubr.f32.gmra.mrb[0].mxu0 %v343
  %v458 = vpop.f32.mrb[0].mxu0
  %v459 = vadd.f32 %v336, %v458
  %v460 = vpop.f32.mrb[0].mxu0
  %461 = vmatprep.mubr.f32.mxu0 0.0
  %462 = vmatmul.mubr.f32.gmra.mrb[0].mxu0 %v346
  %v463 = vpop.f32.mrb[0].mxu0
  %v464 = vadd.f32 %v336, %v463
  %v465 = vpop.f32.mrb[0].mxu0
  %466 = vmatprep.mubr.f32.mxu0 0.0
  %467 = vmatmul.mubr.f32.gmra.mrb[0].mxu0 %v349
  %v468 = vpop.f32.mrb[0].mxu0
  %v469 = vadd.f32 %v336, %v468
  %v470 = vpop.f32.mrb[0].mxu0
  %471 = vmatprep.mubr.f32.mxu0 0.0
  %472 = vmatmul.mubr.f32.gmra.mrb[0].mxu0 %v352
  %v473 = vpop.f32.mrb[0].mxu0
  %v474 = vadd.f32 %v336, %v473
  %v475 = vpop.f32.mrb[0].mxu0
  %476 = vmatprep.mubr.f32.mxu0 0.0
  %477 = vmatmul.mubr.f32.gmra.mrb[0].mxu0 %v355
  %v478 = vpop.f32.mrb[0].mxu0
  %v479 = vadd.f32 %v336, %v478
  %v480 = vpop.f32.mrb[0].mxu0
  %481 = vmatprep.mubr.f32.mxu0 0.0
  %482 = vmatmul.mubr.f32.gmra.mrb[0].mxu0 %v358
  %v483 = vpop.f32.mrb[0].mxu0
  %v484 = vadd.f32 %v336, %v483
  %v485 = vpop.f32.mrb[0].mxu0
  %486 = vmatprep.mubr.f32.mxu0 0.0
  %487 = vmatmul.mubr.f32.gmra.mrb[0].mxu0 %v361
  %v488 = vpop.f32.mrb[0].mxu0
  %v489 = vadd.f32 %v336, %v488
  %v490 = vpop.f32.mrb[0].mxu0
  %491 = vmatprep.mubr.f32.mxu0 0.0
  %492 = vmatmul.mubr.f32.gmra.mrb[0].mxu0 %v364
  %v493 = vpop.f32.mrb[0].mxu0
  %v494 = vadd.f32 %v336, %v493
  %v495 = vpop.f32.mrb[0].mxu0
  %496 = vmatprep.mubr.f32.mxu0 0.0
  %497 = vmatmul.mubr.f32.gmra.mrb[0].mxu0 %v367
  %v498 = vpop.f32.mrb[0].mxu0
  %v499 = vadd.f32 %v336, %v498
  %v500 = vpop.f32.mrb[0].mxu0
  %501 = vmatprep.mubr.f32.mxu0 0.0
  %502 = vmatmul.mubr.f32.gmra.mrb[0].mxu0 %v370
  %v503 = vpop.f32.mrb[0].mxu0
  %v504 = vadd.f32 %v336, %v503
  %v505 = vpop.f32.mrb[0].mxu0
  %506 = vmatprep.mubr.f32.mxu0 0.0
  %507 = vmatmul.mubr.f32.gmra.mrb[0].mxu0 %v373
  %v508 = vpop.f32.mrb[0].mxu0
  %v509 = vadd.f32 %v336, %v508
  %v510 = vpop.f32.mrb[0].mxu0
  %511 = vmatprep.mubr.f32.mxu0 0.0
  %512 = vmatmul.mubr.f32.gmra.mrb[0].mxu0 %v376
  %v513 = vpop.f32.mrb[0].mxu0
  %v514 = vadd.f32 %v336, %v513
  %v515 = vpop.f32.mrb[0].mxu0
  %516 = vmatprep.mubr.f32.mxu0 0.0
  %517 = vmatmul.mubr.f32.gmra.mrb[0].mxu0 %v379
  %v518 = vpop.f32.mrb[0].mxu0
  %v519 = vadd.f32 %v336, %v518
  %v520 = vpop.f32.mrb[0].mxu0
  %521 = vmatprep.mubr.f32.mxu0 0.0
  %522 = vmatmul.mubr.f32.gmra.mrb[0].mxu0 %v382
  %v523 = vpop.f32.mrb[0].mxu0
  %v524 = vadd.f32 %v336, %v523
  %v525 = vpop.f32.mrb[0].mxu0
  %526 = vmatprep.mubr.f32.mxu0 0.0
  %527 = vmatmul.mubr.f32.gmra.mrb[0].mxu0 %v385
  %v528 = vpop.f32.mrb[0].mxu0
  %v529 = vadd.f32 %v336, %v528
  %v530 = vpop.f32.mrb[0].mxu0
  %531 = vdwg.mxu0
  %v532 = vmul.f32 %v454, %v454
  %v533 = vmul.f32 %v459, %v459
  %v534 = vmul.f32 %v464, %v464
  %v535 = vmul.f32 %v469, %v469
  %v536 = vmul.f32 %v474, %v474
  %v537 = vmul.f32 %v479, %v479
  %v538 = vmul.f32 %v484, %v484
  %v539 = vmul.f32 %v489, %v489
  %v540 = vmul.f32 %v494, %v494
  %v541 = vmul.f32 %v499, %v499
  %v542 = vmul.f32 %v504, %v504
  %v543 = vmul.f32 %v509, %v509
  %v544 = vmul.f32 %v514, %v514
  %v545 = vmul.f32 %v519, %v519
  %v546 = vmul.f32 %v524, %v524
  %v547 = vmul.f32 %v529, %v529
  %548 = vadd.xlane.f32.xlu0 %v532
  %v549 = vpop.xlane.xlu0 %548
  %550 = vadd.xlane.f32.xlu0 %v533
  %v551 = vpop.xlane.xlu0 %550
  %552 = vadd.xlane.f32.xlu0 %v534
  %v553 = vpop.xlane.xlu0 %552
  %554 = vadd.xlane.f32.xlu0 %v535
  %v555 = vpop.xlane.xlu0 %554
  %556 = vadd.xlane.f32.xlu0 %v536
  %v557 = vpop.xlane.xlu0 %556
  %558 = vadd.xlane.f32.xlu0 %v537
  %v559 = vpop.xlane.xlu0 %558
  %560 = vadd.xlane.f32.xlu0 %v538
  %v561 = vpop.xlane.xlu0 %560
  %562 = vadd.xlane.f32.xlu0 %v539
  %v563 = vpop.xlane.xlu0 %562
  %564 = vadd.xlane.f32.xlu0 %v540
  %v565 = vpop.xlane.xlu0 %564
  %566 = vadd.xlane.f32.xlu0 %v541
  %v567 = vpop.xlane.xlu0 %566
  %568 = vadd.xlane.f32.xlu0 %v542
  %v569 = vpop.xlane.xlu0 %568
  %570 = vadd.xlane.f32.xlu0 %v543
  %v571 = vpop.xlane.xlu0 %570
  %572 = vadd.xlane.f32.xlu0 %v544
  %v573 = vpop.xlane.xlu0 %572
  %574 = vadd.xlane.f32.xlu0 %v545
  %v575 = vpop.xlane.xlu0 %574
  %576 = vadd.xlane.f32.xlu0 %v546
  %v577 = vpop.xlane.xlu0 %576
  %578 = vadd.xlane.f32.xlu0 %v547
  %v579 = vpop.xlane.xlu0 %578
  %v580 = vrsqrt.pop %v549
  %v581 = vrsqrt.pop %v551
  %v582 = vrsqrt.pop %v553
  %v583 = vrsqrt.pop %v555
  %v584 = vrsqrt.pop %v557
  %v585 = vrsqrt.pop %v559
  %v586 = vrsqrt.pop %v561
  %v587 = vrsqrt.pop %v563
  %v588 = vrsqrt.pop %v565
  %v589 = vrsqrt.pop %v567
  %v590 = vrsqrt.pop %v569
  %v591 = vrsqrt.pop %v571
  %v592 = vrsqrt.pop %v573
  %v593 = vrsqrt.pop %v575
  %v594 = vrsqrt.pop %v577
  %v595 = vrsqrt.pop %v579
  %v596 = vmul.f32 %v454, %v580
  %v597 = vmul.f32 %v459, %v581
  %v598 = vmul.f32 %v464, %v582
  %v599 = vmul.f32 %v469, %v583
  %v600 = vmul.f32 %v474, %v584
  %v601 = vmul.f32 %v479, %v585
  %v602 = vmul.f32 %v484, %v586
  %v603 = vmul.f32 %v489, %v587
  %v604 = vmul.f32 %v494, %v588
  %v605 = vmul.f32 %v499, %v589
  %v606 = vmul.f32 %v504, %v590
  %v607 = vmul.f32 %v509, %v591
  %v608 = vmul.f32 %v514, %v592
  %v609 = vmul.f32 %v519, %v593
  %v610 = vmul.f32 %v524, %v594
  %v611 = vmul.f32 %v529, %v595
  %612 = vst [vmem:[%s5] sm:$0xff] %v596
  %613 = vst [vmem:[%s5 + $0x8] sm:$0xff] %v597
  %614 = vst [vmem:[%s5 + $0x10] sm:$0xff] %v598
  %615 = vst [vmem:[%s5 + $0x18] sm:$0xff] %v599
  %616 = vst [vmem:[%s5 + $0x20] sm:$0xff] %v600
  %617 = vst [vmem:[%s5 + $0x28] sm:$0xff] %v601
  %618 = vst [vmem:[%s5 + $0x30] sm:$0xff] %v602
  %619 = vst [vmem:[%s5 + $0x38] sm:$0xff] %v603
  %620 = vst [vmem:[%s5 + $0x40] sm:$0xff] %v604
  %621 = vst [vmem:[%s5 + $0x48] sm:$0xff] %v605
  %622 = vst [vmem:[%s5 + $0x50] sm:$0xff] %v606
  %623 = vst [vmem:[%s5 + $0x58] sm:$0xff] %v607
  %624 = vst [vmem:[%s5 + $0x60] sm:$0xff] %v608
  %625 = vst [vmem:[%s5 + $0x68] sm:$0xff] %v609
  %626 = vst [vmem:[%s5 + $0x70] sm:$0xff] %v610
  %627 = vst [vmem:[%s5 + $0x78] sm:$0xff] %v611
  // Predicated region
  $region22: #{scmogcn_forward.4} parent=0 // pred_check
    _
  $region23: #{scmogcn_forward.4} parent=0 // pred_check_branch
    %629 = sbr.rel (0) target = $region25
  $region24: #{scmogcn_forward.4} parent=0 // pred_region
    _
  $region25: #{scmogcn_forward.4} parent=0 // pred_fallthru
    _
  // Predicated region
  $region26: #{scmogcn_forward.4} parent=0 // pred_check
    _
  $region27: #{scmogcn_forward.4} parent=0 // pred_check_branch
    %631 = sbr.rel (0) target = $region29
  $region28: #{scmogcn_forward.4} parent=0 // pred_region
    _
  $region29: #{scmogcn_forward.4} parent=0 // pred_fallthru
    _

</llo_original>
